<compile_context>
chip_gen: v7x
topology: tpu7x:2x2x1
jax: 0.10.0
libtpu: 0.0.40
codegen_flags: <defaults>
</compile_context>

<pallas_src>
import functools

import jax
import jax.numpy as jnp
from jax import lax
from jax.experimental import pallas as pl
from jax.experimental.pallas import tpu as pltpu


def _round_up(n: int, m: int) -> int:
    return ((n + m - 1) // m) * m


@functools.lru_cache(maxsize=None)
def _roll_shift_sign() -> int:
    """Determine pltpu.roll's shift convention once (tiny probe kernel).

    Returns +1 if pltpu.roll(x, s, axis) == jnp.roll(x, s, axis) (result[j] = x[j-s]),
    else -1, so the conv tap shifts below are correct under either convention.
    """
    def probe(x_ref, o_ref):
        o_ref[...] = pltpu.roll(x_ref[...], 1, axis=1)

    x = lax.broadcasted_iota(jnp.float32, (8, 128), 1)
    y = pl.pallas_call(probe, out_shape=jax.ShapeDtypeStruct((8, 128), jnp.float32))(x)
    return 1 if float(y[0, 1]) == 0.0 else -1


def _shift_stack(a, K: int, P: int, sign: int):
    """Stack the K tap-shifted copies of `a` ((C, Lpad)) along the sublane axis.

    Block k satisfies block_k[:, l] = a_zero_padded[:, l + k - P] for every valid
    column l < L; roll wrap-around only lands in the discarded/masked columns >= L
    (the wrapper guarantees Lpad - L >= P and zero padding there).
    """
    Lpad = a.shape[-1]
    parts = []
    for k in range(K):
        s = (sign * (P - k)) % Lpad
        parts.append(a if s == 0 else pltpu.roll(a, s, axis=1))
    return jnp.concatenate(parts, axis=0)


def _double_conv_kernel(x_ref, w1_ref, w2_ref, gamma_ref, beta_ref, out_ref,
                        *, K, L, P, residual, eps, roll_sign):
    # x_ref     : (1, C_in_p, Lpad) f32   (columns [L, Lpad) and padded channels are zero)
    # w1_ref    : (C_mid, K*C_in_p) bf16  (tap-major fold: [c, k*C_in_p + ci] = w1[c, ci, k])
    # w2_ref    : (C_out, K*C_mid)  bf16
    # gamma/beta: (C_mid, 1)        f32
    # out_ref   : (1, C_out, Lpad)
    x = x_ref[0]                                    # (C_in_p, Lpad) f32
    Lpad = x.shape[-1]
    c_mid = w1_ref.shape[0]

    # ---- conv1: single MXU matmul, contraction = K*C_in ----
    xs = _shift_stack(x, K, P, roll_sign).astype(jnp.bfloat16)          # (K*C_in_p, Lpad)
    acc1 = jnp.dot(w1_ref[...], xs, preferred_element_type=jnp.float32)  # (C_mid, Lpad) f32

    # ---- GroupNorm(num_groups=1): stats over the valid (C_mid, L) columns, in f32 ----
    valid = lax.broadcasted_iota(jnp.int32, (c_mid, Lpad), 1) < L
    inv_n = 1.0 / (c_mid * L)
    mean = jnp.sum(jnp.where(valid, acc1, 0.0)) * inv_n
    var = jnp.sum(jnp.where(valid, jnp.square(acc1 - mean), 0.0)) * inv_n
    scale = gamma_ref[...] * lax.rsqrt(var + eps)   # (C_mid, 1)
    bias = beta_ref[...] - mean * scale
    h = acc1 * scale + bias                         # fused normalize + affine

    # ---- GELU (exact erf, matching torch.nn.GELU default) ----
    h = jax.nn.gelu(h, approximate=False)
    # zero padding columns so conv2 sees proper zero padding (and rolls wrap in zeros)
    h = jnp.where(valid, h, 0.0)

    # ---- conv2: single MXU matmul, contraction = K*C_mid ----
    hs = _shift_stack(h, K, P, roll_sign).astype(jnp.bfloat16)          # (K*C_mid, Lpad)
    acc2 = jnp.dot(w2_ref[...], hs, preferred_element_type=jnp.float32)  # (C_out, Lpad) f32

    if residual:  # only valid when C_out == C_in (checked in the wrapper)
        acc2 = acc2 + x[:acc2.shape[0]]

    out_ref[0] = jax.nn.gelu(acc2, approximate=False).astype(out_ref.dtype)


def double_conv(x, w1, w2, gamma, beta, *, kernel_size=5, residual=False, eps=1e-5):
    """x: (B, C_in, L); w1: (C_mid, C_in, K); w2: (C_out, C_mid, K) [torch layouts]."""
    B, C_in, L = x.shape
    C_mid, C_in_w, K = w1.shape
    C_out = w2.shape[0]
    assert C_in_w == C_in and K == kernel_size and w2.shape[1] == C_mid
    if residual and C_out != C_in:
        raise ValueError("residual=True requires out_channels == in_channels")
    P = (K - 1) // 2

    # Lane-dense length: multiple of 128 with >= P trailing zeros (absorbs both the
    # conv 'same' right-padding and roll wrap-around). Sublane-align input channels.
    Lpad = _round_up(L + P, 128)
    C_in_p = _round_up(C_in, 8)

    xpad = jnp.pad(x.astype(jnp.float32),
                   ((0, 0), (0, C_in_p - C_in), (0, Lpad - L)))

    # Fold the K taps into the contraction dim (tap-major rows); bf16 MXU operands.
    w1_p = jnp.pad(w1, ((0, 0), (0, C_in_p - C_in), (0, 0)))              # (C_mid, C_in_p, K)
    w1_f = jnp.transpose(w1_p, (0, 2, 1)).reshape(C_mid, K * C_in_p).astype(jnp.bfloat16)
    w2_f = jnp.transpose(w2, (0, 2, 1)).reshape(C_out, K * C_mid).astype(jnp.bfloat16)
    gamma2 = gamma.reshape(C_mid, 1).astype(jnp.float32)
    beta2 = beta.reshape(C_mid, 1).astype(jnp.float32)

    kernel = functools.partial(_double_conv_kernel, K=K, L=L, P=P,
                               residual=residual, eps=eps,
                               roll_sign=_roll_shift_sign())

    out_pad = pl.pallas_call(
        kernel,
        out_shape=jax.ShapeDtypeStruct((B, C_out, Lpad), x.dtype),
        grid=(B,),
        in_specs=[
            pl.BlockSpec((1, C_in_p, Lpad), lambda b: (b, 0, 0)),
            pl.BlockSpec((C_mid, K * C_in_p), lambda b: (0, 0)),
            pl.BlockSpec((C_out, K * C_mid), lambda b: (0, 0)),
            pl.BlockSpec((C_mid, 1), lambda b: (0, 0)),
            pl.BlockSpec((C_mid, 1), lambda b: (0, 0)),
        ],
        out_specs=pl.BlockSpec((1, C_out, Lpad), lambda b: (b, 0, 0)),
        compiler_params=pltpu.CompilerParams(
            dimension_semantics=("parallel",),
            vmem_limit_bytes=32 * 1024 * 1024),
    )(xpad, w1_f, w2_f, gamma2, beta2)

    return out_pad[:, :, :L]


def _reference(x, w1, w2, gamma, beta, *, kernel_size=5, eps=1e-5, residual=False):
    """Pure-JAX f32 reference replicating the PyTorch forward."""
    P = (kernel_size - 1) // 2
    dn = ("NCH", "OIH", "NCH")
    y1 = lax.conv_general_dilated(x, w1, (1,), [(P, P)], dimension_numbers=dn)
    mean = jnp.mean(y1, axis=(1, 2), keepdims=True)
    var = jnp.mean(jnp.square(y1 - mean), axis=(1, 2), keepdims=True)
    h = (y1 - mean) / jnp.sqrt(var + eps)
    h = h * gamma[None, :, None] + beta[None, :, None]
    h = jax.nn.gelu(h, approximate=False)
    y2 = lax.conv_general_dilated(h, w2, (1,), [(P, P)], dimension_numbers=dn)
    if residual:
        y2 = y2 + x
    return jax.nn.gelu(y2, approximate=False)


if __name__ == "__main__":
    B, C_in, C_out, L, K = 2, 4, 8, 16, 5
    C_mid = C_out  # module default: mid_channels = out_channels

    key = jax.random.PRNGKey(0)
    kx, k1, k2, kg, kb = jax.random.split(key, 5)
    x = jax.random.normal(kx, (B, C_in, L), dtype=jnp.float32)
    w1 = 0.1 * jax.random.normal(k1, (C_mid, C_in, K), dtype=jnp.float32)
    w2 = 0.1 * jax.random.normal(k2, (C_out, C_mid, K), dtype=jnp.float32)
    gamma = 1.0 + 0.1 * jax.random.normal(kg, (C_mid,), dtype=jnp.float32)
    beta = 0.1 * jax.random.normal(kb, (C_mid,), dtype=jnp.float32)

    # Keep demo weights bf16-representable so the f32 reference isolates the kernel's
    # activation-rounding error (MXU runs bf16 operands with f32 accumulation).
    w1 = w1.astype(jnp.bfloat16).astype(jnp.float32)
    w2 = w2.astype(jnp.bfloat16).astype(jnp.float32)

    out = double_conv(x, w1, w2, gamma, beta, kernel_size=K, residual=False)
    out = jax.block_until_ready(out)

    ref = _reference(x, w1, w2, gamma, beta, kernel_size=K)
    assert out.shape == (B, C_out, L)
    err = float(jnp.max(jnp.abs(out - ref)))
    # Tolerance loosened vs. the all-f32 reference because MXU operands are bf16.
    assert err < 5e-2, f"mismatch vs pure-JAX reference: max abs err = {err}"

    print("KERNEL_OK")
</pallas_src>

<mosaic_0001>
module attributes {stable_mosaic.version = 11 : i64} {
  func.func @probe(%arg0: memref<8x128xf32, #tpu.memory_space<vmem>>, %arg1: memref<8x128xf32, #tpu.memory_space<vmem>>) attributes {dimension_semantics = [], scalar_prefetch = 0 : i64, scratch_operands = 0 : i64, tpu.core_type = #tpu.core_type<tc>} {
    %c0 = arith.constant 0 : index
    %c0_0 = arith.constant 0 : index
    %0 = vector.load %arg0[%c0, %c0_0] : memref<8x128xf32, #tpu.memory_space<vmem>>, vector<8x128xf32>
    %c1_i32 = arith.constant 1 : i32
    %1 = tpu.dynamic_rotate %0 by %c1_i32 dim 1 : vector<8x128xf32>, i32 -> vector<8x128xf32>
    %c0_1 = arith.constant 0 : index
    %c0_2 = arith.constant 0 : index
    %2 = vector.load %arg1[%c0_1, %c0_2] : memref<8x128xf32, #tpu.memory_space<vmem>>, vector<8x128xf32>
    tpu.vector_store %arg1[%c0_1, %c0_2], %1 {strides = array<i32>} : memref<8x128xf32, #tpu.memory_space<vmem>>, vector<8x128xf32>,
    return
  }
}

</mosaic_0001>

<llo_original>
// kernel: tpu_custom_call.1
$region0: #{tpu_custom_call.1}
  #allocation0 [shape = 'u32[]', space=smem, size = 0x4, offset = 0x4, fixed_abs, tag = 'smem constant byte address 0x4 - core index']
  #allocation1 [shape = 'u32[144,128]{1,0:T(1,128)}', space=vmem, size = 0x12000, scoped, tag = 'internal scratch']
  %s0 = inlined_call_operand.hbm [shape: f32[8,128], index: 0, kind: input, shape index: {}]
  %s1 = inlined_call_operand.hbm [shape: f32[8,128], index: 1, kind: output, shape index: {}]
  %s2 = sld [smem:[#allocation0]]
  $region18: #{tpu_custom_call.1} parent=0
    _
  %s4 = ssub.s32 1, %s2
  %s5 = scalar_select 0, %s4, %s2
  $region1: #{tpu_custom_call.1} parent=0
    #allocation2 [shape = 'u8[4096]{0}', space=vmem, size = 0x1000, scoped, tag = 'input window, operand 0, single buffered']
    #allocation3 [shape = 's32[1]{0}', space=sflag, size = 0x4, scoped, tag = 'scoped memory for tpu_custom_call.1']
    #allocation4 [shape = 's32[1]{0}', space=sflag, size = 0x4, scoped, tag = 'scoped memory for tpu_custom_call.1']
    #allocation5 [shape = 'u8[4096]{0}', space=vmem, size = 0x1000, scoped, tag = 'output window, operand 0, single buffered']
    %6 = vsyncpa [#allocation3], 0
    %7 = vsyncpa [#allocation4], 0
    // Predicated region
    $region2: #{tpu_custom_call.1} parent=1 // pred_check
      _
    $region3: #{tpu_custom_call.1} parent=1 // pred_check_branch
      %9 = sbr.rel (0) target = $region5
    $region4: #{tpu_custom_call.1} parent=1 // pred_region
      %s11 = ssub.s32 128, 128
      %12 = vsyncadd [#allocation3], %s11
      %s14 = sshll.u32 [#allocation2], 4
      %s15 = int_to_ptr.vmem [resolvable:$true] %s14
      %17 = dma.hbm_to_vmem [thread:$0]  %s0, 128, %s15, [#allocation3]
    $region5: #{tpu_custom_call.1} parent=1 // pred_fallthru
      _
    // Predicated region
    $region6: #{tpu_custom_call.1} parent=1 // pred_check
      _
    $region7: #{tpu_custom_call.1} parent=1 // pred_check_branch
      %19 = sbr.rel (0) target = $region9
    $region8: #{tpu_custom_call.1} parent=1 // pred_region
      %20 = dma.done [#allocation3], 128
    $region9: #{tpu_custom_call.1} parent=1 // pred_fallthru
      _
    %v21 = vld [vmem:[#allocation2] sm:$0xff]
    %22 = vrot.lane.b32.xlu0 %v21, 1
    %v23 = vpop.permute.xlu0 %22
    %24 = vst [vmem:[#allocation5] sm:$0xff] %v23
    // Predicated region
    $region10: #{tpu_custom_call.1} parent=1 // pred_check
      _
    $region11: #{tpu_custom_call.1} parent=1 // pred_check_branch
      %26 = sbr.rel (0) target = $region13
    $region12: #{tpu_custom_call.1} parent=1 // pred_region
      %s28 = ssub.s32 128, 128
      %29 = vsyncadd [#allocation4], %s28
      %s31 = sshll.u32 [#allocation5], 4
      %s32 = int_to_ptr.vmem [resolvable:$true] %s31
      %34 = dma.vmem_to_hbm [thread:$0]  %s32, 128, %s1, [#allocation4]
    $region13: #{tpu_custom_call.1} parent=1 // pred_fallthru
      _
    // Predicated region
    $region14: #{tpu_custom_call.1} parent=1 // pred_check
      _
    $region15: #{tpu_custom_call.1} parent=1 // pred_check_branch
      %36 = sbr.rel (0) target = $region17
    $region16: #{tpu_custom_call.1} parent=1 // pred_region
      %37 = dma.done [#allocation4], 128
    $region17: #{tpu_custom_call.1} parent=1 // pred_fallthru
      _
    %38 = vsyncpa [#allocation3], 1
    %39 = vsyncpa [#allocation4], 1

</llo_original>
